<compile_context>
chip_gen: v7x
topology: tpu7x:2x2x1
jax: 0.10.0
libtpu: 0.0.40
codegen_flags: <defaults>
</compile_context>

<pallas_src>
from functools import partial

import jax
import jax.numpy as jnp
from jax.experimental import pallas as pl
from jax.experimental.pallas import tpu as pltpu


# ---------------------------------------------------------------------------
# small helpers
# ---------------------------------------------------------------------------

def _row_tile(m, cap=256):
    """Largest row tile that divides m, is a multiple of 8 and <= cap (else m)."""
    if m <= cap:
        return m
    for t in range(cap - cap % 8, 7, -8):
        if m % t == 0:
            return t
    return m


def _gelu_exact(x):
    # TODO(synk): nn.GELU default is erf-based; lax.erf lowering inside Mosaic is not
    # guaranteed on every generation, so use the Abramowitz&Stegun 7.1.26 polynomial
    # (|err| < 1.5e-7, f32-indistinguishable) built only from exp / mul / add.
    z = x * 0.7071067811865476
    s = jnp.where(z >= 0.0, 1.0, -1.0)
    az = jnp.abs(z)
    t = 1.0 / (1.0 + 0.3275911 * az)
    poly = ((((1.061405429 * t - 1.453152027) * t + 1.421413741) * t
             - 0.284496736) * t + 0.254829592) * t
    erf = s * (1.0 - poly * jnp.exp(-az * az))
    return 0.5 * x * (1.0 + erf)


# ---------------------------------------------------------------------------
# fused LayerNorm + Linear (row-tiled grid, weights pinned resident)
# ---------------------------------------------------------------------------

def _ln_linear_kernel(x_ref, g_ref, be_ref, w_ref, b_ref, o_ref, *, eps):
    x = x_ref[...].astype(jnp.float32)
    mu = jnp.mean(x, axis=-1, keepdims=True)
    xc = x - mu
    var = jnp.mean(xc * xc, axis=-1, keepdims=True)
    y = xc * jax.lax.rsqrt(var + eps) * g_ref[...] + be_ref[...]
    o_ref[...] = (
        jnp.dot(y.astype(jnp.bfloat16), w_ref[...].astype(jnp.bfloat16),
                preferred_element_type=jnp.float32) + b_ref[...]
    ).astype(o_ref.dtype)


def ln_linear(x, g, be, w, b, eps=1e-6, out_dtype=jnp.float32):
    """x: (..., C) -> LN(x) @ w + b, row-tiled grid so both v7x TensorCores get work."""
    c = x.shape[-1]
    n = w.shape[-1]
    x2 = x.reshape(-1, c)
    m = x2.shape[0]
    tm = _row_tile(m)
    out = pl.pallas_call(
        partial(_ln_linear_kernel, eps=eps),
        out_shape=jax.ShapeDtypeStruct((m, n), out_dtype),
        grid=(m // tm,),
        in_specs=[
            pl.BlockSpec((tm, c), lambda i: (i, 0)),
            pl.BlockSpec((1, c), lambda i: (0, 0)),
            pl.BlockSpec((1, c), lambda i: (0, 0)),
            pl.BlockSpec((c, n), lambda i: (0, 0)),
            pl.BlockSpec((1, n), lambda i: (0, 0)),
        ],
        out_specs=pl.BlockSpec((tm, n), lambda i: (i, 0)),
        compiler_params=pltpu.CompilerParams(dimension_semantics=("parallel",)),
    )(x2, g.reshape(1, c), be.reshape(1, c), w, b.reshape(1, n))
    return out.reshape(x.shape[:-1] + (n,))


# ---------------------------------------------------------------------------
# fused MSDeformAttn core: softmax + sampling math + bilinear scatter + value matmul
#                          + out_proj + gamma + residual, one kernel per attention
# ---------------------------------------------------------------------------

def _msda_kernel(ref_ref, proj_ref, val_ref, ow_ref, ob_ref, g_ref, res_ref, o_ref, *,
                 spatial_shapes, n_heads, n_points):
    n_levels = len(spatial_shapes)
    lq, d = o_ref.shape
    hd = d // n_heads
    npts = n_points
    n_off = n_heads * n_levels * npts * 2

    refp = ref_ref[...].astype(jnp.float32)                 # (Lq, 2*nL)  [x0,y0,x1,y1,...]
    proj = proj_ref[...].astype(jnp.float32)                # (Lq, nH*nL*nP*3)
    value = val_ref[...].astype(jnp.bfloat16)               # (Lin, d), MXU operand

    # hoisted: per-level column iotas, pixel-space reference coords, head lane mask
    cols = [jax.lax.broadcasted_iota(jnp.int32, (lq, hl * wl), 1)
            for (hl, wl) in spatial_shapes]
    base_x = [refp[:, 2 * l:2 * l + 1] * spatial_shapes[l][1] - 0.5 for l in range(n_levels)]
    base_y = [refp[:, 2 * l + 1:2 * l + 2] * spatial_shapes[l][0] - 0.5 for l in range(n_levels)]
    lane = jax.lax.broadcasted_iota(jnp.int32, (1, d), 1)

    attn_cat = jnp.zeros((lq, d), jnp.float32)
    for h in range(n_heads):
        # softmax over this head's nL*nP attention logits (exp -> EUP slot)
        lg = proj[:, n_off + h * n_levels * npts:n_off + (h + 1) * n_levels * npts]
        lg = lg - jnp.max(lg, axis=-1, keepdims=True)
        e = jnp.exp(lg)
        aw = e / jnp.sum(e, axis=-1, keepdims=True)          # (Lq, nL*nP)

        acc_parts = []
        for l, (hl, wl) in enumerate(spatial_shapes):
            hw = hl * wl
            acc = jnp.zeros((lq, hw), jnp.float32)
            for pt in range(npts):
                oc = 2 * ((h * n_levels + l) * npts + pt)
                px = base_x[l] + proj[:, oc:oc + 1]
                py = base_y[l] + proj[:, oc + 1:oc + 2]
                w = aw[:, l * npts + pt:l * npts + pt + 1]
                x0 = jnp.floor(px)
                y0 = jnp.floor(py)
                dx = px - x0
                dy = py - y0
                x0i = x0.astype(jnp.int32)
                y0i = y0.astype(jnp.int32)
                x1i = x0i + 1
                y1i = y0i + 1
                # shared per-point validity (grid_sample padding_mode='zeros')
                vx0 = (x0i >= 0) & (x0i < wl)
                vx1 = (x1i >= 0) & (x1i < wl)
                vy0 = (y0i >= 0) & (y0i < hl)
                vy1 = (y1i >= 0) & (y1i < hl)

                def corner(ix, iy, valid, cw):
                    idx = jnp.where(valid, iy * wl + ix, -1)     # -1 never matches
                    return jnp.where(cols[l] == idx, cw, 0.0)

                # attention weight folded into the bilinear corner weights
                acc = acc + corner(x0i, y0i, vx0 & vy0, w * (1.0 - dx) * (1.0 - dy))
                acc = acc + corner(x1i, y0i, vx1 & vy0, w * dx * (1.0 - dy))
                acc = acc + corner(x0i, y1i, vx0 & vy1, w * (1.0 - dx) * dy)
                acc = acc + corner(x1i, y1i, vx1 & vy1, w * dx * dy)
            acc_parts.append(acc)

        acc_h = acc_parts[0] if n_levels == 1 else jnp.concatenate(acc_parts, axis=-1)
        # one long-K dot per head against the full value; keep only this head's lanes
        big = jnp.dot(acc_h.astype(jnp.bfloat16), value,
                      preferred_element_type=jnp.float32)        # (Lq, d)
        attn_cat = attn_cat + jnp.where((lane // hd) == h, big, 0.0)

    y = (jnp.dot(attn_cat.astype(jnp.bfloat16), ow_ref[...].astype(jnp.bfloat16),
                 preferred_element_type=jnp.float32) + ob_ref[...])
    o_ref[...] = (res_ref[...].astype(jnp.float32) + g_ref[...] * y).astype(o_ref.dtype)


def ms_deform_attn(p, query, reference_points, feat, spatial_shapes, n_heads, n_points,
                   qn, fn, gamma, residual):
    """MSDeformAttn (ratio=1.0, reference_points[-1]==2) with query_norm/feat_norm,
    softmax/sampling glue, output projection and the (gamma-scaled) residual fused in."""
    bsz, lq, d = query.shape
    nlv = len(spatial_shapes)

    # fused feat_norm + value projection (bf16 output -> half the DMA into the core kernel)
    value = ln_linear(feat, fn[0], fn[1], p["value_w"], p["value_b"],
                      out_dtype=jnp.bfloat16)                                 # (B, Lin, d)

    # fused query_norm + [sampling_offsets ++ attention_logits] projection (one kernel)
    ow = jnp.concatenate([p["off_w"], p["attw_w"]], axis=1)
    ob = jnp.concatenate([p["off_b"], p["attw_b"]], axis=0)
    proj = ln_linear(query, qn[0], qn[1], ow, ob)                             # (B, Lq, nH*nL*nP*3)

    refs = reference_points.astype(jnp.float32).reshape(bsz, lq, nlv * 2)
    lin = value.shape[1]
    pw = proj.shape[-1]

    return pl.pallas_call(
        partial(_msda_kernel, spatial_shapes=tuple(spatial_shapes),
                n_heads=n_heads, n_points=n_points),
        out_shape=jax.ShapeDtypeStruct((bsz, lq, d), jnp.float32),
        grid=(bsz,),
        in_specs=[
            pl.BlockSpec((None, lq, nlv * 2), lambda b: (b, 0, 0)),
            pl.BlockSpec((None, lq, pw), lambda b: (b, 0, 0)),
            pl.BlockSpec((None, lin, d), lambda b: (b, 0, 0)),
            pl.BlockSpec((d, d), lambda b: (0, 0)),
            pl.BlockSpec((1, d), lambda b: (0, 0)),
            pl.BlockSpec((1, d), lambda b: (0, 0)),
            pl.BlockSpec((None, lq, d), lambda b: (b, 0, 0)),
        ],
        out_specs=pl.BlockSpec((None, lq, d), lambda b: (b, 0, 0)),
        compiler_params=pltpu.CompilerParams(dimension_semantics=("parallel",)),
    )(refs, proj, value, p["out_w"], p["out_b"].reshape(1, d),
      gamma.reshape(1, d), residual)


# ---------------------------------------------------------------------------
# fully fused ConvFFN: ffn_norm -> fc1 -> 3x depthwise 3x3 -> GELU -> fc2 -> residual
# ---------------------------------------------------------------------------

def _convffn_kernel(q_ref, lnw_ref, lnb_ref, f1w_ref, f1b_ref, dww_ref, dwb_ref,
                    f2w_ref, f2b_ref, o_ref, pad1_ref, pad2_ref, pad3_ref, *, H, W, eps):
    n_tok, dim = q_ref.shape
    hidden = f1w_ref.shape[1]
    n = n_tok // 21

    x = q_ref[...].astype(jnp.float32)
    mu = jnp.mean(x, axis=-1, keepdims=True)
    xc = x - mu
    var = jnp.mean(xc * xc, axis=-1, keepdims=True)
    yn = xc * jax.lax.rsqrt(var + eps) * lnw_ref[...] + lnb_ref[...]
    h1 = (jnp.dot(yn.astype(jnp.bfloat16), f1w_ref[...].astype(jnp.bfloat16),
                  preferred_element_type=jnp.float32) + f1b_ref[...])        # (21n, hidden)

    dwb = dwb_ref[...]

    def dwconv(tokens, hh, ww, pad_ref):
        # halo built in a VMEM scratch; the 9 taps are static slices (no im2col, no HBM pad)
        pad_ref[...] = jnp.zeros(pad_ref.shape, pad_ref.dtype)
        pad_ref[1:hh + 1, 1:ww + 1, :] = tokens.reshape(hh, ww, hidden)
        acc = None
        for dy in range(3):
            for dx in range(3):
                term = pad_ref[dy:dy + hh, dx:dx + ww, :] * dww_ref[dy * 3 + dx]
                acc = term if acc is None else acc + term
        return (acc + dwb).reshape(hh * ww, hidden)

    c1 = dwconv(h1[:16 * n], 2 * H, 2 * W, pad1_ref)
    c2 = dwconv(h1[16 * n:20 * n], H, W, pad2_ref)
    c3 = dwconv(h1[20 * n:], H // 2, W // 2, pad3_ref)
    act = _gelu_exact(jnp.concatenate([c1, c2, c3], axis=0))                 # (21n, hidden)

    y = (jnp.dot(act.astype(jnp.bfloat16), f2w_ref[...].astype(jnp.bfloat16),
                 preferred_element_type=jnp.float32) + f2b_ref[...])
    o_ref[...] = (x + y).astype(o_ref.dtype)


def conv_ffn(p, query, ln_w, ln_b, H, W):
    """query + ConvFFN(ffn_norm(query), H, W) as a single batch-gridded kernel."""
    bsz, n_tok, dim = query.shape
    assert n_tok % 21 == 0, "ConvFFN expects 21*n tokens (16n + 4n + n)"
    hidden = p["fc1_w"].shape[1]
    return pl.pallas_call(
        partial(_convffn_kernel, H=H, W=W, eps=1e-6),
        out_shape=jax.ShapeDtypeStruct((bsz, n_tok, dim), jnp.float32),
        grid=(bsz,),
        in_specs=[
            pl.BlockSpec((None, n_tok, dim), lambda b: (b, 0, 0)),
            pl.BlockSpec((1, dim), lambda b: (0, 0)),
            pl.BlockSpec((1, dim), lambda b: (0, 0)),
            pl.BlockSpec((dim, hidden), lambda b: (0, 0)),
            pl.BlockSpec((1, hidden), lambda b: (0, 0)),
            pl.BlockSpec((9, hidden), lambda b: (0, 0)),
            pl.BlockSpec((1, hidden), lambda b: (0, 0)),
            pl.BlockSpec((hidden, dim), lambda b: (0, 0)),
            pl.BlockSpec((1, dim), lambda b: (0, 0)),
        ],
        out_specs=pl.BlockSpec((None, n_tok, dim), lambda b: (b, 0, 0)),
        scratch_shapes=[
            pltpu.VMEM((2 * H + 2, 2 * W + 2, hidden), jnp.float32),
            pltpu.VMEM((H + 2, W + 2, hidden), jnp.float32),
            pltpu.VMEM((H // 2 + 2, W // 2 + 2, hidden), jnp.float32),
        ],
        compiler_params=pltpu.CompilerParams(dimension_semantics=("parallel",)),
    )(query, ln_w.reshape(1, dim), ln_b.reshape(1, dim),
      p["fc1_w"], p["fc1_b"].reshape(1, hidden),
      p["dw_w"].reshape(9, hidden), p["dw_b"].reshape(1, hidden),
      p["fc2_w"], p["fc2_b"].reshape(1, dim))


# ---------------------------------------------------------------------------
# Injector / Extractor / InteractionBlock (thin JAX glue around the kernels)
# ---------------------------------------------------------------------------

def injector_forward(p, query, reference_points, feat, spatial_shapes, n_heads, n_points):
    return ms_deform_attn(p["attn"], query, reference_points, feat, spatial_shapes,
                          n_heads, n_points, qn=(p["qn_w"], p["qn_b"]),
                          fn=(p["fn_w"], p["fn_b"]), gamma=p["gamma"], residual=query)


def extractor_forward(p, query, reference_points, feat, spatial_shapes, H, W,
                      something, n_heads, n_points):
    dim = query.shape[-1]
    ones = jnp.ones((dim,), jnp.float32)
    query = ms_deform_attn(p["attn"], query, reference_points, feat, spatial_shapes,
                           n_heads, n_points, qn=(p["qn_w"], p["qn_b"]),
                           fn=(p["fn_w"], p["fn_b"]), gamma=ones, residual=query)
    query = conv_ffn(p["ffn"], query, p["ffn_norm_w"], p["ffn_norm_b"], H, W)
    # TODO(synk): the `something is not None` branch (attn_2 MSDeformAttn + nn.MultiheadAttention)
    # is not exercised; this harness passes something=None, a valid forward path of the module.
    return query, something


def interaction_block_forward(params, x, c, blocks, deform_inputs1, deform_inputs2,
                              H, W, something=None, n_heads=4, n_points=4):
    ref1, shapes1, _lsi1 = deform_inputs1
    ref2, shapes2, _lsi2 = deform_inputs2
    x = injector_forward(params["injector"], x, ref1, c, shapes1, n_heads, n_points)
    for blk in blocks:
        x = blk(x, H, W)
    c, something = extractor_forward(params["extractor"], c, ref2, x, shapes2,
                                     H, W, something, n_heads, n_points)
    # extra_extractor=False -> self.extra_extractors is None
    return x, c, something


# ---------------------------------------------------------------------------
# deterministic synthetic parameter init (shapes from the module __init__)
# ---------------------------------------------------------------------------

def init_params(key, dim, n_heads, n_points, cffn_ratio=0.25):
    hidden = int(dim * cffn_ratio)
    kit = iter(jax.random.split(key, 40))

    def dense(din, dout, scale=0.02):
        w = scale * jax.random.normal(next(kit), (din, dout), jnp.float32)
        b = scale * jax.random.normal(next(kit), (dout,), jnp.float32)
        return w, b

    def msda(n_levels):
        vw, vb = dense(dim, dim)
        ow, ob = dense(dim, n_heads * n_levels * n_points * 2, scale=0.1)
        aww, awb = dense(dim, n_heads * n_levels * n_points)
        pw, pb = dense(dim, dim)
        return dict(value_w=vw, value_b=vb, off_w=ow, off_b=ob,
                    attw_w=aww, attw_b=awb, out_w=pw, out_b=pb)

    fc1w, fc1b = dense(dim, hidden)
    fc2w, fc2b = dense(hidden, dim)
    # NOTE: real PyTorch depthwise weights are (C,1,3,3); here we assume (3,3,C) layout.
    dww = 0.1 * jax.random.normal(next(kit), (3, 3, hidden), jnp.float32)
    dwb = 0.02 * jax.random.normal(next(kit), (hidden,), jnp.float32)

    ones = jnp.ones((dim,), jnp.float32)
    zeros = jnp.zeros((dim,), jnp.float32)
    return dict(
        injector=dict(
            qn_w=ones, qn_b=zeros, fn_w=ones, fn_b=zeros,
            attn=msda(3),                         # Injector uses n_levels=3
            gamma=0.1 * ones,                     # synthetic non-zero (module default init_values=0.0)
        ),
        extractor=dict(
            qn_w=ones, qn_b=zeros, fn_w=ones, fn_b=zeros,
            attn=msda(1),                         # Extractor uses n_levels=1
            ffn_norm_w=ones, ffn_norm_b=zeros,
            ffn=dict(fc1_w=fc1w, fc1_b=fc1b, dw_w=dww, dw_b=dwb, fc2_w=fc2w, fc2_b=fc2b),
        ),
    )


# ---------------------------------------------------------------------------
# main
# ---------------------------------------------------------------------------

if __name__ == "__main__":
    key = jax.random.PRNGKey(0)
    B, dim, n_heads, n_points = 2, 32, 4, 4
    H = W = 8

    shapes_c = ((2 * H, 2 * W), (H, W), (H // 2, W // 2))   # the 3 scales of c
    shapes_x = ((H, W),)                                    # single scale of x
    n_c = sum(h * w for h, w in shapes_c)                   # 336
    n_x = H * W                                             # 64

    kx, kc, kp = jax.random.split(key, 3)
    x = 0.5 * jax.random.normal(kx, (B, n_x, dim), jnp.float32)
    c = 0.5 * jax.random.normal(kc, (B, n_c, dim), jnp.float32)

    def make_ref_points(query_shapes, n_levels):
        pts = []
        for (hs, ws) in query_shapes:
            yy, xx = jnp.meshgrid((jnp.arange(hs, dtype=jnp.float32) + 0.5) / hs,
                                  (jnp.arange(ws, dtype=jnp.float32) + 0.5) / ws,
                                  indexing="ij")
            pts.append(jnp.stack([xx.reshape(-1), yy.reshape(-1)], axis=-1))  # (x, y)
        ref = jnp.concatenate(pts, axis=0)
        return jnp.broadcast_to(ref[None, :, None, :], (B, ref.shape[0], n_levels, 2))

    def level_start_index(shapes):
        starts, acc = [], 0
        for (h, w) in shapes:
            starts.append(acc)
            acc += h * w
        return tuple(starts)

    deform_inputs1 = (make_ref_points(((H, W),), len(shapes_c)), shapes_c,
                      level_start_index(shapes_c))
    deform_inputs2 = (make_ref_points(shapes_c, len(shapes_x)), shapes_x,
                      level_start_index(shapes_x))

    params = init_params(kp, dim, n_heads, n_points)

    x_out, c_out, something_out = interaction_block_forward(
        params, x, c, blocks=(), deform_inputs1=deform_inputs1,
        deform_inputs2=deform_inputs2, H=H, W=W, something=None,
        n_heads=n_heads, n_points=n_points)

    jax.block_until_ready((x_out, c_out))
    assert x_out.shape == (B, n_x, dim)
    assert c_out.shape == (B, n_c, dim)
    assert something_out is None
    assert bool(jnp.all(jnp.isfinite(x_out))) and bool(jnp.all(jnp.isfinite(c_out)))
    print("KERNEL_OK")
</pallas_src>

<mosaic_0001>
module attributes {stable_mosaic.version = 11 : i64} {
  func.func @_ln_linear_kernel(%arg0: i32, %arg1: memref<224x32xf32, #tpu.memory_space<vmem>>, %arg2: memref<1x32xf32, #tpu.memory_space<vmem>>, %arg3: memref<1x32xf32, #tpu.memory_space<vmem>>, %arg4: memref<32x32xf32, #tpu.memory_space<vmem>>, %arg5: memref<1x32xf32, #tpu.memory_space<vmem>>, %arg6: memref<224x32xbf16, #tpu.memory_space<vmem>>) attributes {dimension_semantics = [#tpu.dimension_semantics<parallel>], iteration_bounds = array<i64: 3>, scalar_prefetch = 0 : i64, scratch_operands = 0 : i64, tpu.core_type = #tpu.core_type<tc>, window_params = [{transform_indices = @transform_0, window_bounds = array<i64: 224, 32>}, {pipeline_mode = #tpu.pipeline_mode<synchronous>, transform_indices = @transform_1, window_bounds = array<i64: 1, 32>}, {pipeline_mode = #tpu.pipeline_mode<synchronous>, transform_indices = @transform_2, window_bounds = array<i64: 1, 32>}, {pipeline_mode = #tpu.pipeline_mode<synchronous>, transform_indices = @transform_3, window_bounds = array<i64: 32, 32>}, {pipeline_mode = #tpu.pipeline_mode<synchronous>, transform_indices = @transform_4, window_bounds = array<i64: 1, 32>}, {transform_indices = @transform_5, window_bounds = array<i64: 224, 32>}]} {
    %c0 = arith.constant 0 : index
    %c0_0 = arith.constant 0 : index
    %0 = vector.load %arg1[%c0, %c0_0] : memref<224x32xf32, #tpu.memory_space<vmem>>, vector<224x32xf32>
    %cst = arith.constant dense<0.000000e+00> : vector<224xf32>
    %1 = vector.multi_reduction <add>, %0, %cst [1] : vector<224x32xf32> to vector<224xf32>
    %2 = vector.shape_cast %1 : vector<224xf32> to vector<224x1xf32>
    %cst_1 = arith.constant 3.200000e+01 : f32
    %3 = vector.broadcast %cst_1 : f32 to vector<224x1xf32>
    %4 = arith.divf %2, %3 : vector<224x1xf32>
    %5 = vector.broadcast %4 : vector<224x1xf32> to vector<224x32xf32>
    %6 = arith.subf %0, %5 : vector<224x32xf32>
    %7 = arith.mulf %6, %6 : vector<224x32xf32>
    %cst_2 = arith.constant dense<0.000000e+00> : vector<224xf32>
    %8 = vector.multi_reduction <add>, %7, %cst_2 [1] : vector<224x32xf32> to vector<224xf32>
    %9 = vector.shape_cast %8 : vector<224xf32> to vector<224x1xf32>
    %cst_3 = arith.constant 3.200000e+01 : f32
    %10 = vector.broadcast %cst_3 : f32 to vector<224x1xf32>
    %11 = arith.divf %9, %10 : vector<224x1xf32>
    %cst_4 = arith.constant 9.99999997E-7 : f32
    %12 = vector.broadcast %cst_4 : f32 to vector<224x1xf32>
    %13 = arith.addf %11, %12 : vector<224x1xf32>
    %14 = math.rsqrt %13 : vector<224x1xf32>
    %15 = vector.broadcast %14 : vector<224x1xf32> to vector<224x32xf32>
    %16 = arith.mulf %6, %15 : vector<224x32xf32>
    %c0_5 = arith.constant 0 : index
    %c0_6 = arith.constant 0 : index
    %17 = vector.load %arg2[%c0_5, %c0_6] : memref<1x32xf32, #tpu.memory_space<vmem>>, vector<1x32xf32>
    %18 = vector.broadcast %17 : vector<1x32xf32> to vector<224x32xf32>
    %19 = arith.mulf %16, %18 : vector<224x32xf32>
    %c0_7 = arith.constant 0 : index
    %c0_8 = arith.constant 0 : index
    %20 = vector.load %arg3[%c0_7, %c0_8] : memref<1x32xf32, #tpu.memory_space<vmem>>, vector<1x32xf32>
    %21 = vector.broadcast %20 : vector<1x32xf32> to vector<224x32xf32>
    %22 = arith.addf %19, %21 : vector<224x32xf32>
    %23 = arith.truncf %22 : vector<224x32xf32> to vector<224x32xbf16>
    %c0_9 = arith.constant 0 : index
    %c0_10 = arith.constant 0 : index
    %24 = vector.load %arg4[%c0_9, %c0_10] : memref<32x32xf32, #tpu.memory_space<vmem>>, vector<32x32xf32>
    %25 = arith.truncf %24 : vector<32x32xf32> to vector<32x32xbf16>
    %cst_11 = arith.constant dense<0.000000e+00> : vector<224x32xf32>
    %26 = tpu.matmul %23, %25, %cst_11 {dimension_numbers = #tpu.dot_dimension_numbers<[1], [0], [0], [1], [0, 0, 1, 1], [], []>} : vector<224x32xbf16>, vector<32x32xbf16>, vector<224x32xf32> -> vector<224x32xf32>
    %c0_12 = arith.constant 0 : index
    %c0_13 = arith.constant 0 : index
    %27 = vector.load %arg5[%c0_12, %c0_13] : memref<1x32xf32, #tpu.memory_space<vmem>>, vector<1x32xf32>
    %28 = vector.broadcast %27 : vector<1x32xf32> to vector<224x32xf32>
    %29 = arith.addf %26, %28 : vector<224x32xf32>
    %30 = arith.truncf %29 : vector<224x32xf32> to vector<224x32xbf16>
    %c0_14 = arith.constant 0 : index
    %c0_15 = arith.constant 0 : index
    %31 = vector.load %arg6[%c0_14, %c0_15] : memref<224x32xbf16, #tpu.memory_space<vmem>>, vector<224x32xbf16>
    tpu.vector_store %arg6[%c0_14, %c0_15], %30 {strides = array<i32>} : memref<224x32xbf16, #tpu.memory_space<vmem>>, vector<224x32xbf16>,
    return
  }
  func.func @transform_0(%arg0: i32) -> (i32, i32) {
    %c0_i32 = arith.constant 0 : i32
    %c0_i32_0 = arith.constant 0 : i32
    return %arg0, %c0_i32 : i32, i32
  }
  func.func @transform_1(%arg0: i32) -> (i32, i32) {
    %c0_i32 = arith.constant 0 : i32
    %c0_i32_0 = arith.constant 0 : i32
    %c0_i32_1 = arith.constant 0 : i32
    return %c0_i32, %c0_i32_0 : i32, i32
  }
  func.func @transform_2(%arg0: i32) -> (i32, i32) {
    %c0_i32 = arith.constant 0 : i32
    %c0_i32_0 = arith.constant 0 : i32
    %c0_i32_1 = arith.constant 0 : i32
    return %c0_i32, %c0_i32_0 : i32, i32
  }
  func.func @transform_3(%arg0: i32) -> (i32, i32) {
    %c0_i32 = arith.constant 0 : i32
    %c0_i32_0 = arith.constant 0 : i32
    %c0_i32_1 = arith.constant 0 : i32
    return %c0_i32, %c0_i32_0 : i32, i32
  }
  func.func @transform_4(%arg0: i32) -> (i32, i32) {
    %c0_i32 = arith.constant 0 : i32
    %c0_i32_0 = arith.constant 0 : i32
    %c0_i32_1 = arith.constant 0 : i32
    return %c0_i32, %c0_i32_0 : i32, i32
  }
  func.func @transform_5(%arg0: i32) -> (i32, i32) {
    %c0_i32 = arith.constant 0 : i32
    %c0_i32_0 = arith.constant 0 : i32
    return %arg0, %c0_i32 : i32, i32
  }
}

</mosaic_0001>

<llo_original>
// kernel: tpu_custom_call.1
$region0: #{tpu_custom_call.1}
  #allocation0 [shape = 'u32[]', space=smem, size = 0x4, offset = 0x4, fixed_abs, tag = 'smem constant byte address 0x4 - core index']
  #allocation1 [shape = 'u32[144,128]{1,0:T(1,128)}', space=vmem, size = 0x12000, scoped, tag = 'internal scratch']
  %s0 = inlined_call_operand.vmem [shape: f32[672,32], index: 0, kind: input, shape index: {}]
  %s1 = inlined_call_operand.vmem [shape: f32[1,32], index: 1, kind: input, shape index: {}]
  %s2 = inlined_call_operand.vmem [shape: f32[1,32], index: 2, kind: input, shape index: {}]
  %s3 = inlined_call_operand.vmem [shape: f32[32,32], index: 3, kind: input, shape index: {}]
  %s4 = inlined_call_operand.vmem [shape: f32[1,32], index: 4, kind: input, shape index: {}]
  %s5 = inlined_call_operand.vmem [shape: bf16[672,32], index: 5, kind: output, shape index: {}]
  %s6 = sld [smem:[#allocation0]]
  $region53: #{tpu_custom_call.1} parent=0
    _
  %s8 = ssub.s32 1, %s6
  %s9 = scalar_select 0, %s8, %s6
  loop: start=0, step=1, limit=5
  $region2: #{tpu_custom_call.1} parent=0 // loop_pre_header
    _
  $region3: #{tpu_custom_call.1} parent=0 // loop_header
    %s11 = sphi 0, %s15
    %p12 = scmp.ge.s32.totalorder %s11, 5
    %s21 = sphi 0, %s23
    %s24 = sphi 0, %s21
    %s25 = sphi 0, %s24
    %s41 = sphi 0, %s25
    %s45 = sphi 0, %s45
    %s47 = sphi 0, %s45
    %s48 = sphi 0, %s47
    %s62 = sphi 0, %s48
    %s66 = sphi 0, %s66
    %s68 = sphi 0, %s66
    %s69 = sphi 0, %s68
    %s83 = sphi 0, %s69
    %s87 = sphi 0, %s87
    %s89 = sphi 0, %s87
    %s90 = sphi 0, %s89
    %s104 = sphi 0, %s90
    %s108 = sphi 0, %s108
    %s110 = sphi 0, %s108
    %s111 = sphi 0, %s110
    %s125 = sphi 0, %s111
    %s131 = sphi 0, %s133
    %s134 = sphi 0, %s131
    %s135 = sphi 0, %s134
    %s151 = sphi 0, %s135
  $region4: #{tpu_custom_call.1} parent=0 // loop_header_branch
    %14 = sbr.rel (%p12) target = $region8
  $region5: #{tpu_custom_call.1} parent=0 // loop_body
    %s16 = ssub.s32 %s11, 1
    %s17 = ssub.s32 %s11, 2
    %s18 = sadd.s32 %s11, 1
    %s19 = ssub.s32 %s11, %s18
    %p20 = scmp.eq.s32.totalorder %s19, 0
    %s22 = sadd.s32 %s21, 1
    %s23 = scalar_select %p20, %s21, %s22
    %p26 = pneg %p20
    %p27 = scmp.eq.s32.totalorder %s11, 2
    %p28 = por %p26, %p27
    %p29 = scmp.ne.s32.totalorder %s21, %s24
    %p30 = scmp.eq.s32.totalorder %s11, 0
    %p31 = por %p29, %p30
    %p32 = scmp.ne.s32.totalorder %s21, %s24
    %p33 = scmp.eq.s32.totalorder %s16, 2
    %p34 = por %p32, %p33
    %p35 = scmp.ne.s32.totalorder %s24, %s25
    %p36 = scmp.eq.s32.totalorder %s16, 0
    %p37 = por %p35, %p36
    %p38 = scmp.ne.s32.totalorder %s24, %s25
    %p39 = scmp.eq.s32.totalorder %s17, 2
    %p40 = por %p38, %p39
    %p42 = scmp.ne.s32.totalorder %s25, %s41
    %p43 = scmp.eq.s32.totalorder %s17, 0
    %p44 = por %p42, %p43
    %s46 = sadd.s32 %s45, 1
    %p49 = scmp.eq.s32.totalorder %s11, 2
    %p50 = scmp.ne.s32.totalorder %s45, %s47
    %p51 = scmp.eq.s32.totalorder %s11, 0
    %p52 = por %p50, %p51
    %p53 = scmp.ne.s32.totalorder %s45, %s47
    %p54 = scmp.eq.s32.totalorder %s16, 2
    %p55 = por %p53, %p54
    %p56 = scmp.ne.s32.totalorder %s47, %s48
    %p57 = scmp.eq.s32.totalorder %s16, 0
    %p58 = por %p56, %p57
    %p59 = scmp.ne.s32.totalorder %s47, %s48
    %p60 = scmp.eq.s32.totalorder %s17, 2
    %p61 = por %p59, %p60
    %p63 = scmp.ne.s32.totalorder %s48, %s62
    %p64 = scmp.eq.s32.totalorder %s17, 0
    %p65 = por %p63, %p64
    %s67 = sadd.s32 %s66, 1
    %p70 = scmp.eq.s32.totalorder %s11, 2
    %p71 = scmp.ne.s32.totalorder %s66, %s68
    %p72 = scmp.eq.s32.totalorder %s11, 0
    %p73 = por %p71, %p72
    %p74 = scmp.ne.s32.totalorder %s66, %s68
    %p75 = scmp.eq.s32.totalorder %s16, 2
    %p76 = por %p74, %p75
    %p77 = scmp.ne.s32.totalorder %s68, %s69
    %p78 = scmp.eq.s32.totalorder %s16, 0
    %p79 = por %p77, %p78
    %p80 = scmp.ne.s32.totalorder %s68, %s69
    %p81 = scmp.eq.s32.totalorder %s17, 2
    %p82 = por %p80, %p81
    %p84 = scmp.ne.s32.totalorder %s69, %s83
    %p85 = scmp.eq.s32.totalorder %s17, 0
    %p86 = por %p84, %p85
    %s88 = sadd.s32 %s87, 1
    %p91 = scmp.eq.s32.totalorder %s11, 2
    %p92 = scmp.ne.s32.totalorder %s87, %s89
    %p93 = scmp.eq.s32.totalorder %s11, 0
    %p94 = por %p92, %p93
    %p95 = scmp.ne.s32.totalorder %s87, %s89
    %p96 = scmp.eq.s32.totalorder %s16, 2
    %p97 = por %p95, %p96
    %p98 = scmp.ne.s32.totalorder %s89, %s90
    %p99 = scmp.eq.s32.totalorder %s16, 0
    %p100 = por %p98, %p99
    %p101 = scmp.ne.s32.totalorder %s89, %s90
    %p102 = scmp.eq.s32.totalorder %s17, 2
    %p103 = por %p101, %p102
    %p105 = scmp.ne.s32.totalorder %s90, %s104
    %p106 = scmp.eq.s32.totalorder %s17, 0
    %p107 = por %p105, %p106
    %s109 = sadd.s32 %s108, 1
    %p112 = scmp.eq.s32.totalorder %s11, 2
    %p113 = scmp.ne.s32.totalorder %s108, %s110
    %p114 = scmp.eq.s32.totalorder %s11, 0
    %p115 = por %p113, %p114
    %p116 = scmp.ne.s32.totalorder %s108, %s110
    %p117 = scmp.eq.s32.totalorder %s16, 2
    %p118 = por %p116, %p117
    %p119 = scmp.ne.s32.totalorder %s110, %s111
    %p120 = scmp.eq.s32.totalorder %s16, 0
    %p121 = por %p119, %p120
    %p122 = scmp.ne.s32.totalorder %s110, %s111
    %p123 = scmp.eq.s32.totalorder %s17, 2
    %p124 = por %p122, %p123
    %p126 = scmp.ne.s32.totalorder %s111, %s125
    %p127 = scmp.eq.s32.totalorder %s17, 0
    %p128 = por %p126, %p127
    %s129 = ssub.s32 %s11, %s18
    %p130 = scmp.eq.s32.totalorder %s129, 0
    %s132 = sadd.s32 %s131, 1
    %s133 = scalar_select %p130, %s131, %s132
    %p136 = pneg %p130
    %p137 = scmp.eq.s32.totalorder %s11, 2
    %p138 = por %p136, %p137
    %p139 = scmp.ne.s32.totalorder %s131, %s134
    %p140 = scmp.eq.s32.totalorder %s11, 0
    %p141 = por %p139, %p140
    %p142 = scmp.ne.s32.totalorder %s131, %s134
    %p143 = scmp.eq.s32.totalorder %s16, 2
    %p144 = por %p142, %p143
    %p145 = scmp.ne.s32.totalorder %s134, %s135
    %p146 = scmp.eq.s32.totalorder %s16, 0
    %p147 = por %p145, %p146
    %p148 = scmp.ne.s32.totalorder %s134, %s135
    %p149 = scmp.eq.s32.totalorder %s17, 2
    %p150 = por %p148, %p149
    %p152 = scmp.ne.s32.totalorder %s135, %s151
    %p153 = scmp.eq.s32.totalorder %s17, 0
    %p154 = por %p152, %p153
    %p155 = scmp.le.s32.totalorder 1, %s11
    %p156 = scmp.lt.s32.totalorder %s11, 4
    %p157 = pnand %p155, %p156
    %p158 = pneg %p157
    // Predicated region
    $region9: #{tpu_custom_call.1} parent=5 // pred_check
      _
    $region10: #{tpu_custom_call.1} parent=5 // pred_check_branch
      %160 = sbr.rel (%p157) target = $region12
    $region11: #{tpu_custom_call.1} parent=5 // pred_region
      %s161 = ssub.s32 %s11, 1
      // Predicated region
      $region13: #{tpu_custom_call.1} parent=11 // pred_check
        %p162 = pneg %p58
      $region14: #{tpu_custom_call.1} parent=11 // pred_check_branch
        %164 = sbr.rel (%p162) target = $region16
      $region15: #{tpu_custom_call.1} parent=11 // pred_region
        _
      $region16: #{tpu_custom_call.1} parent=11 // pred_fallthru
        _
      // Predicated region
      $region17: #{tpu_custom_call.1} parent=11 // pred_check
        %p165 = pneg %p79
      $region18: #{tpu_custom_call.1} parent=11 // pred_check_branch
        %167 = sbr.rel (%p165) target = $region20
      $region19: #{tpu_custom_call.1} parent=11 // pred_region
        _
      $region20: #{tpu_custom_call.1} parent=11 // pred_fallthru
        _
      // Predicated region
      $region21: #{tpu_custom_call.1} parent=11 // pred_check
        %p168 = pneg %p100
      $region22: #{tpu_custom_call.1} parent=11 // pred_check_branch
        %170 = sbr.rel (%p168) target = $region24
      $region23: #{tpu_custom_call.1} parent=11 // pred_region
        _
      $region24: #{tpu_custom_call.1} parent=11 // pred_fallthru
        _
      // Predicated region
      $region25: #{tpu_custom_call.1} parent=11 // pred_check
        %p171 = pneg %p121
      $region26: #{tpu_custom_call.1} parent=11 // pred_check_branch
        %173 = sbr.rel (%p171) target = $region28
      $region27: #{tpu_custom_call.1} parent=11 // pred_region
        _
      $region28: #{tpu_custom_call.1} parent=11 // pred_fallthru
        _
    $region12: #{tpu_custom_call.1} parent=5 // pred_fallthru
      _
    %p174 = scmp.lt.s32.totalorder %s11, 3
    // Predicated region
    $region29: #{tpu_custom_call.1} parent=5 // pred_check
      %p175 = pneg %p174
    $region30: #{tpu_custom_call.1} parent=5 // pred_check_branch
      %177 = sbr.rel (%p175) target = $region32
    $region31: #{tpu_custom_call.1} parent=5 // pred_region
      // Predicated region
      $region33: #{tpu_custom_call.1} parent=31 // pred_check
        %p178 = pneg %p31
      $region34: #{tpu_custom_call.1} parent=31 // pred_check_branch
        %180 = sbr.rel (%p178) target = $region36
      $region35: #{tpu_custom_call.1} parent=31 // pred_region
        %s181 = smul.u32 28, %s11
        %p182 = scmp.lt.s32.totalorder %s181, 83
        %s183 = scalar_select %p182, %s181, 83
        %s184 = smul.addr %s183, 8
        %s185 = scalar_lea.vmem %s0, %s184
        %s186 = smul.u32 28, %s11
      $region36: #{tpu_custom_call.1} parent=31 // pred_fallthru
        _
    $region32: #{tpu_custom_call.1} parent=5 // pred_fallthru
      _
    %p187 = scmp.le.s32.totalorder 1, %s11
    %p188 = scmp.lt.s32.totalorder %s11, 4
    %p189 = pnand %p187, %p188
    %p190 = pneg %p189
    // Predicated region
    $region37: #{tpu_custom_call.1} parent=5 // pred_check
      _
    $region38: #{tpu_custom_call.1} parent=5 // pred_check_branch
      %192 = sbr.rel (%p189) target = $region40
    $region39: #{tpu_custom_call.1} parent=5 // pred_region
      %s193 = ssub.s32 %s11, 1
      %s194 = smul.u32 28, %s16
      %p195 = scmp.lt.s32.totalorder %s194, 83
      %s196 = scalar_select %p195, %s194, 83
      %s197 = smul.addr %s196, 8
      %s198 = scalar_lea.vmem %s0, %s197
      %p199 = pneg %p37
      %p200 = pneg %p34
      %p201 = pneg %p58
      %p202 = pneg %p55
      %p203 = pneg %p79
      %p204 = pneg %p76
      %p205 = pneg %p100
      %p206 = pneg %p97
      %p207 = pneg %p121
      %p208 = pneg %p118
      %p209 = pneg %p147
      %p210 = pneg %p144
      %s211 = smul.u32 28, %s16
      %p212 = scmp.lt.s32.totalorder %s211, 83
      %s213 = scalar_select %p212, %s211, 83
      %s214 = smul.addr %s213, 4
      %s215 = scalar_lea.vmem %s5, %s214
      %s216 = smul.u32 28, %s16
      %p217 = scmp.lt.s32.totalorder %s216, 83
      %s218 = scalar_select %p217, %s216, 83
      %s219 = smul.addr %s218, 8
      %s220 = scalar_lea.vmem %s0, %s219
      %s221 = smul.u32 28, %s16
      %s222 = smul.u32 28, %s16
      %p223 = scmp.lt.s32.totalorder %s222, 83
      %s224 = scalar_select %p223, %s222, 83
      %s225 = smul.addr %s224, 4
      %s226 = scalar_lea.vmem %s5, %s225
      %s227 = smul.u32 28, %s16
      %v229 = vld [vmem:[%s220] sm:$0xff]
      %v230 = vld [vmem:[%s220 + $0x8] sm:$0xff]
      %v231 = vld [vmem:[%s220 + $0x10] sm:$0xff]
      %v232 = vld [vmem:[%s220 + $0x18] sm:$0xff]
      %v233 = vld [vmem:[%s220 + $0x20] sm:$0xff]
      %v234 = vld [vmem:[%s220 + $0x28] sm:$0xff]
      %v235 = vld [vmem:[%s220 + $0x30] sm:$0xff]
      %v236 = vld [vmem:[%s220 + $0x38] sm:$0xff]
      %v237 = vld [vmem:[%s220 + $0x40] sm:$0xff]
      %v238 = vld [vmem:[%s220 + $0x48] sm:$0xff]
      %v239 = vld [vmem:[%s220 + $0x50] sm:$0xff]
      %v240 = vld [vmem:[%s220 + $0x58] sm:$0xff]
      %v241 = vld [vmem:[%s220 + $0x60] sm:$0xff]
      %v242 = vld [vmem:[%s220 + $0x68] sm:$0xff]
      %v243 = vld [vmem:[%s220 + $0x70] sm:$0xff]
      %v244 = vld [vmem:[%s220 + $0x78] sm:$0xff]
      %v245 = vld [vmem:[%s220 + $0x80] sm:$0xff]
      %v246 = vld [vmem:[%s220 + $0x88] sm:$0xff]
      %v247 = vld [vmem:[%s220 + $0x90] sm:$0xff]
      %v248 = vld [vmem:[%s220 + $0x98] sm:$0xff]
      %v249 = vld [vmem:[%s220 + $0xa0] sm:$0xff]
      %v250 = vld [vmem:[%s220 + $0xa8] sm:$0xff]
      %v251 = vld [vmem:[%s220 + $0xb0] sm:$0xff]
      %v252 = vld [vmem:[%s220 + $0xb8] sm:$0xff]
      %v253 = vld [vmem:[%s220 + $0xc0] sm:$0xff]
      %v254 = vld [vmem:[%s220 + $0xc8] sm:$0xff]
      %v255 = vld [vmem:[%s220 + $0xd0] sm:$0xff]
      %v256 = vld [vmem:[%s220 + $0xd8] sm:$0xff]
      %vm257 = vcmask 261120
      %v258 = vsel %vm257, %v229, 0.0
      %259 = vadd.xlane.f32.xlu0 %v258
      %v260 = vpop.xlane.xlu0 %259
      %v261 = vsel %vm257, %v230, 0.0
      %262 = vadd.xlane.f32.xlu0 %v261
      %v263 = vpop.xlane.xlu0 %262
      %v264 = vsel %vm257, %v231, 0.0
      %265 = vadd.xlane.f32.xlu0 %v264
      %v266 = vpop.xlane.xlu0 %265
      %v267 = vsel %vm257, %v232, 0.0
      %268 = vadd.xlane.f32.xlu0 %v267
      %v269 = vpop.xlane.xlu0 %268
      %v270 = vsel %vm257, %v233, 0.0
      %271 = vadd.xlane.f32.xlu0 %v270
      %v272 = vpop.xlane.xlu0 %271
      %v273 = vsel %vm257, %v234, 0.0
      %274 = vadd.xlane.f32.xlu0 %v273
      %v275 = vpop.xlane.xlu0 %274
      %v276 = vsel %vm257, %v235, 0.0
      %277 = vadd.xlane.f32.xlu0 %v276
      %v278 = vpop.xlane.xlu0 %277
      %v279 = vsel %vm257, %v236, 0.0
      %280 = vadd.xlane.f32.xlu0 %v279
      %v281 = vpop.xlane.xlu0 %280
      %v282 = vsel %vm257, %v237, 0.0
      %283 = vadd.xlane.f32.xlu0 %v282
      %v284 = vpop.xlane.xlu0 %283
      %v285 = vsel %vm257, %v238, 0.0
      %286 = vadd.xlane.f32.xlu0 %v285
      %v287 = vpop.xlane.xlu0 %286
      %v288 = vsel %vm257, %v239, 0.0
      %289 = vadd.xlane.f32.xlu0 %v288
      %v290 = vpop.xlane.xlu0 %289
      %v291 = vsel %vm257, %v240, 0.0
      %292 = vadd.xlane.f32.xlu0 %v291
      %v293 = vpop.xlane.xlu0 %292
      %v294 = vsel %vm257, %v241, 0.0
      %295 = vadd.xlane.f32.xlu0 %v294
      %v296 = vpop.xlane.xlu0 %295
      %v297 = vsel %vm257, %v242, 0.0
      %298 = vadd.xlane.f32.xlu0 %v297
      %v299 = vpop.xlane.xlu0 %298
      %v300 = vsel %vm257, %v243, 0.0
      %301 = vadd.xlane.f32.xlu0 %v300
      %v302 = vpop.xlane.xlu0 %301
      %v303 = vsel %vm257, %v244, 0.0
      %304 = vadd.xlane.f32.xlu0 %v303
      %v305 = vpop.xlane.xlu0 %304
      %v306 = vsel %vm257, %v245, 0.0
      %307 = vadd.xlane.f32.xlu0 %v306
      %v308 = vpop.xlane.xlu0 %307
      %v309 = vsel %vm257, %v246, 0.0
      %310 = vadd.xlane.f32.xlu0 %v309
      %v311 = vpop.xlane.xlu0 %310
      %v312 = vsel %vm257, %v247, 0.0
      %313 = vadd.xlane.f32.xlu0 %v312
      %v314 = vpop.xlane.xlu0 %313
      %v315 = vsel %vm257, %v248, 0.0
      %316 = vadd.xlane.f32.xlu0 %v315
      %v317 = vpop.xlane.xlu0 %316
      %v318 = vsel %vm257, %v249, 0.0
      %319 = vadd.xlane.f32.xlu0 %v318
      %v320 = vpop.xlane.xlu0 %319
      %v321 = vsel %vm257, %v250, 0.0
      %322 = vadd.xlane.f32.xlu0 %v321
      %v323 = vpop.xlane.xlu0 %322
      %v324 = vsel %vm257, %v251, 0.0
      %325 = vadd.xlane.f32.xlu0 %v324
      %v326 = vpop.xlane.xlu0 %325
      %v327 = vsel %vm257, %v252, 0.0
      %328 = vadd.xlane.f32.xlu0 %v327
      %v329 = vpop.xlane.xlu0 %328
      %v330 = vsel %vm257, %v253, 0.0
      %331 = vadd.xlane.f32.xlu0 %v330
      %v332 = vpop.xlane.xlu0 %331
      %v333 = vsel %vm257, %v254, 0.0
      %334 = vadd.xlane.f32.xlu0 %v333
      %v335 = vpop.xlane.xlu0 %334
      %v336 = vsel %vm257, %v255, 0.0
      %337 = vadd.xlane.f32.xlu0 %v336
      %v338 = vpop.xlane.xlu0 %337
      %v339 = vsel %vm257, %v256, 0.0
      %340 = vadd.xlane.f32.xlu0 %v339
      %v341 = vpop.xlane.xlu0 %340
      %v342 = vrcp.pop 32.0
      %v343 = vmul.f32 %v260, %v342
      %v344 = vmul.f32 %v263, %v342
      %v345 = vmul.f32 %v266, %v342
      %v346 = vmul.f32 %v269, %v342
      %v347 = vmul.f32 %v272, %v342
      %v348 = vmul.f32 %v275, %v342
      %v349 = vmul.f32 %v278, %v342
      %v350 = vmul.f32 %v281, %v342
      %v351 = vmul.f32 %v284, %v342
      %v352 = vmul.f32 %v287, %v342
      %v353 = vmul.f32 %v290, %v342
      %v354 = vmul.f32 %v293, %v342
      %v355 = vmul.f32 %v296, %v342
      %v356 = vmul.f32 %v299, %v342
      %v357 = vmul.f32 %v302, %v342
      %v358 = vmul.f32 %v305, %v342
      %v359 = vmul.f32 %v308, %v342
      %v360 = vmul.f32 %v311, %v342
      %v361 = vmul.f32 %v314, %v342
      %v362 = vmul.f32 %v317, %v342
      %v363 = vmul.f32 %v320, %v342
      %v364 = vmul.f32 %v323, %v342
      %v365 = vmul.f32 %v326, %v342
      %v366 = vmul.f32 %v329, %v342
      %v367 = vmul.f32 %v332, %v342
      %v368 = vmul.f32 %v335, %v342
      %v369 = vmul.f32 %v338, %v342
      %v370 = vmul.f32 %v341, %v342
      %v371 = vsub.f32 %v229, %v343
      %v372 = vsub.f32 %v230, %v344
      %v373 = vsub.f32 %v231, %v345
      %v374 = vsub.f32 %v232, %v346
      %v375 = vsub.f32 %v233, %v347
      %v376 = vsub.f32 %v234, %v348
      %v377 = vsub.f32 %v235, %v349
      %v378 = vsub.f32 %v236, %v350
      %v379 = vsub.f32 %v237, %v351
      %v380 = vsub.f32 %v238, %v352
      %v381 = vsub.f32 %v239, %v353
      %v382 = vsub.f32 %v240, %v354
      %v383 = vsub.f32 %v241, %v355
      %v384 = vsub.f32 %v242, %v356
      %v385 = vsub.f32 %v243, %v357
      %v386 = vsub.f32 %v244, %v358
      %v387 = vsub.f32 %v245, %v359
      %v388 = vsub.f32 %v246, %v360
      %v389 = vsub.f32 %v247, %v361
      %v390 = vsub.f32 %v248, %v362
      %v391 = vsub.f32 %v249, %v363
      %v392 = vsub.f32 %v250, %v364
      %v393 = vsub.f32 %v251, %v365
      %v394 = vsub.f32 %v252, %v366
      %v395 = vsub.f32 %v253, %v367
      %v396 = vsub.f32 %v254, %v368
      %v397 = vsub.f32 %v255, %v369
      %v398 = vsub.f32 %v256, %v370
      %v399 = vmul.f32 %v371, %v371
      %v400 = vmul.f32 %v372, %v372
      %v401 = vmul.f32 %v373, %v373
      %v402 = vmul.f32 %v374, %v374
      %v403 = vmul.f32 %v375, %v375
      %v404 = vmul.f32 %v376, %v376
      %v405 = vmul.f32 %v377, %v377
      %v406 = vmul.f32 %v378, %v378
      %v407 = vmul.f32 %v379, %v379
      %v408 = vmul.f32 %v380, %v380
      %v409 = vmul.f32 %v381, %v381
      %v410 = vmul.f32 %v382, %v382
      %v411 = vmul.f32 %v383, %v383
      %v412 = vmul.f32 %v384, %v384
      %v413 = vmul.f32 %v385, %v385
      %v414 = vmul.f32 %v386, %v386
      %v415 = vmul.f32 %v387, %v387
      %v416 = vmul.f32 %v388, %v388
      %v417 = vmul.f32 %v389, %v389
      %v418 = vmul.f32 %v390, %v390
      %v419 = vmul.f32 %v391, %v391
      %v420 = vmul.f32 %v392, %v392
      %v421 = vmul.f32 %v393, %v393
      %v422 = vmul.f32 %v394, %v394
      %v423 = vmul.f32 %v395, %v395
      %v424 = vmul.f32 %v396, %v396
      %v425 = vmul.f32 %v397, %v397
      %v426 = vmul.f32 %v398, %v398
      %v427 = vsel %vm257, %v399, 0.0
      %428 = vadd.xlane.f32.xlu0 %v427
      %v429 = vpop.xlane.xlu0 %428
      %v430 = vsel %vm257, %v400, 0.0
      %431 = vadd.xlane.f32.xlu0 %v430
      %v432 = vpop.xlane.xlu0 %431
      %v433 = vsel %vm257, %v401, 0.0
      %434 = vadd.xlane.f32.xlu0 %v433
      %v435 = vpop.xlane.xlu0 %434
      %v436 = vsel %vm257, %v402, 0.0
      %437 = vadd.xlane.f32.xlu0 %v436
      %v438 = vpop.xlane.xlu0 %437
      %v439 = vsel %vm257, %v403, 0.0
      %440 = vadd.xlane.f32.xlu0 %v439
      %v441 = vpop.xlane.xlu0 %440
      %v442 = vsel %vm257, %v404, 0.0
      %443 = vadd.xlane.f32.xlu0 %v442
      %v444 = vpop.xlane.xlu0 %443
      %v445 = vsel %vm257, %v405, 0.0
      %446 = vadd.xlane.f32.xlu0 %v445
      %v447 = vpop.xlane.xlu0 %446
      %v448 = vsel %vm257, %v406, 0.0
      %449 = vadd.xlane.f32.xlu0 %v448
      %v450 = vpop.xlane.xlu0 %449
      %v451 = vsel %vm257, %v407, 0.0
      %452 = vadd.xlane.f32.xlu0 %v451
      %v453 = vpop.xlane.xlu0 %452
      %v454 = vsel %vm257, %v408, 0.0
      %455 = vadd.xlane.f32.xlu0 %v454
      %v456 = vpop.xlane.xlu0 %455
      %v457 = vsel %vm257, %v409, 0.0
      %458 = vadd.xlane.f32.xlu0 %v457
      %v459 = vpop.xlane.xlu0 %458
      %v460 = vsel %vm257, %v410, 0.0
      %461 = vadd.xlane.f32.xlu0 %v460
      %v462 = vpop.xlane.xlu0 %461
      %v463 = vsel %vm257, %v411, 0.0
      %464 = vadd.xlane.f32.xlu0 %v463
      %v465 = vpop.xlane.xlu0 %464
      %v466 = vsel %vm257, %v412, 0.0
      %467 = vadd.xlane.f32.xlu0 %v466
      %v468 = vpop.xlane.xlu0 %467
      %v469 = vsel %vm257, %v413, 0.0
      %470 = vadd.xlane.f32.xlu0 %v469
      %v471 = vpop.xlane.xlu0 %470
      %v472 = vsel %vm257, %v414, 0.0
      %473 = vadd.xlane.f32.xlu0 %v472
      %v474 = vpop.xlane.xlu0 %473
      %v475 = vsel %vm257, %v415, 0.0
      %476 = vadd.xlane.f32.xlu0 %v475
      %v477 = vpop.xlane.xlu0 %476
      %v478 = vsel %vm257, %v416, 0.0
      %479 = vadd.xlane.f32.xlu0 %v478
      %v480 = vpop.xlane.xlu0 %479
      %v481 = vsel %vm257, %v417, 0.0
      %482 = vadd.xlane.f32.xlu0 %v481
      %v483 = vpop.xlane.xlu0 %482
      %v484 = vsel %vm257, %v418, 0.0
      %485 = vadd.xlane.f32.xlu0 %v484
      %v486 = vpop.xlane.xlu0 %485
      %v487 = vsel %vm257, %v419, 0.0
      %488 = vadd.xlane.f32.xlu0 %v487
      %v489 = vpop.xlane.xlu0 %488
      %v490 = vsel %vm257, %v420, 0.0
      %491 = vadd.xlane.f32.xlu0 %v490
      %v492 = vpop.xlane.xlu0 %491
      %v493 = vsel %vm257, %v421, 0.0
      %494 = vadd.xlane.f32.xlu0 %v493
      %v495 = vpop.xlane.xlu0 %494
      %v496 = vsel %vm257, %v422, 0.0
      %497 = vadd.xlane.f32.xlu0 %v496
      %v498 = vpop.xlane.xlu0 %497
      %v499 = vsel %vm257, %v423, 0.0
      %500 = vadd.xlane.f32.xlu0 %v499
      %v501 = vpop.xlane.xlu0 %500
      %v502 = vsel %vm257, %v424, 0.0
      %503 = vadd.xlane.f32.xlu0 %v502
      %v504 = vpop.xlane.xlu0 %503
      %v505 = vsel %vm257, %v425, 0.0
      %506 = vadd.xlane.f32.xlu0 %v505
      %v507 = vpop.xlane.xlu0 %506
      %v508 = vsel %vm257, %v426, 0.0
      %509 = vadd.xlane.f32.xlu0 %v508
      %v510 = vpop.xlane.xlu0 %509
      %v511 = vmul.f32 %v429, %v342
      %v512 = vmul.f32 %v432, %v342
      %v513 = vmul.f32 %v435, %v342
      %v514 = vmul.f32 %v438, %v342
      %v515 = vmul.f32 %v441, %v342
      %v516 = vmul.f32 %v444, %v342
      %v517 = vmul.f32 %v447, %v342
      %v518 = vmul.f32 %v450, %v342
      %v519 = vmul.f32 %v453, %v342
      %v520 = vmul.f32 %v456, %v342
      %v521 = vmul.f32 %v459, %v342
      %v522 = vmul.f32 %v462, %v342
      %v523 = vmul.f32 %v465, %v342
      %v524 = vmul.f32 %v468, %v342
      %v525 = vmul.f32 %v471, %v342
      %v526 = vmul.f32 %v474, %v342
      %v527 = vmul.f32 %v477, %v342
      %v528 = vmul.f32 %v480, %v342
      %v529 = vmul.f32 %v483, %v342
      %v530 = vmul.f32 %v486, %v342
      %v531 = vmul.f32 %v489, %v342
      %v532 = vmul.f32 %v492, %v342
      %v533 = vmul.f32 %v495, %v342
      %v534 = vmul.f32 %v498, %v342
      %v535 = vmul.f32 %v501, %v342
      %v536 = vmul.f32 %v504, %v342
      %v537 = vmul.f32 %v507, %v342
      %v538 = vmul.f32 %v510, %v342
      %v539 = vadd.f32 %v511, 1e-06
      %v540 = vadd.f32 %v512, 1e-06
      %v541 = vadd.f32 %v513, 1e-06
      %v542 = vadd.f32 %v514, 1e-06
      %v543 = vadd.f32 %v515, 1e-06
      %v544 = vadd.f32 %v516, 1e-06
      %v545 = vadd.f32 %v517, 1e-06
      %v546 = vadd.f32 %v518, 1e-06
      %v547 = vadd.f32 %v519, 1e-06
      %v548 = vadd.f32 %v520, 1e-06
      %v549 = vadd.f32 %v521, 1e-06
      %v550 = vadd.f32 %v522, 1e-06
      %v551 = vadd.f32 %v523, 1e-06
      %v552 = vadd.f32 %v524, 1e-06
      %v553 = vadd.f32 %v525, 1e-06
      %v554 = vadd.f32 %v526, 1e-06
      %v555 = vadd.f32 %v527, 1e-06
      %v556 = vadd.f32 %v528, 1e-06
      %v557 = vadd.f32 %v529, 1e-06
      %v558 = vadd.f32 %v530, 1e-06
      %v559 = vadd.f32 %v531, 1e-06
      %v560 = vadd.f32 %v532, 1e-06
      %v561 = vadd.f32 %v533, 1e-06
      %v562 = vadd.f32 %v534, 1e-06
      %v563 = vadd.f32 %v535, 1e-06
      %v564 = vadd.f32 %v536, 1e-06
      %v565 = vadd.f32 %v537, 1e-06
      %v566 = vadd.f32 %v538, 1e-06
      %v567 = vrsqrt.pop %v539
      %v568 = vrsqrt.pop %v540
      %v569 = vrsqrt.pop %v541
      %v570 = vrsqrt.pop %v542
      %v571 = vrsqrt.pop %v543
      %v572 = vrsqrt.pop %v544
      %v573 = vrsqrt.pop %v545
      %v574 = vrsqrt.pop %v546
      %v575 = vrsqrt.pop %v547
      %v576 = vrsqrt.pop %v548
      %v577 = vrsqrt.pop %v549
      %v578 = vrsqrt.pop %v550
      %v579 = vrsqrt.pop %v551
      %v580 = vrsqrt.pop %v552
      %v581 = vrsqrt.pop %v553
      %v582 = vrsqrt.pop %v554
      %v583 = vrsqrt.pop %v555
      %v584 = vrsqrt.pop %v556
      %v585 = vrsqrt.pop %v557
      %v586 = vrsqrt.pop %v558
      %v587 = vrsqrt.pop %v559
      %v588 = vrsqrt.pop %v560
      %v589 = vrsqrt.pop %v561
      %v590 = vrsqrt.pop %v562
      %v591 = vrsqrt.pop %v563
      %v592 = vrsqrt.pop %v564
      %v593 = vrsqrt.pop %v565
      %v594 = vrsqrt.pop %v566
      %v595 = vmul.f32 %v371, %v567
      %v596 = vmul.f32 %v372, %v568
      %v597 = vmul.f32 %v373, %v569
      %v598 = vmul.f32 %v374, %v570
      %v599 = vmul.f32 %v375, %v571
      %v600 = vmul.f32 %v376, %v572
      %v601 = vmul.f32 %v377, %v573
      %v602 = vmul.f32 %v378, %v574
      %v603 = vmul.f32 %v379, %v575
      %v604 = vmul.f32 %v380, %v576
      %v605 = vmul.f32 %v381, %v577
      %v606 = vmul.f32 %v382, %v578
      %v607 = vmul.f32 %v383, %v579
      %v608 = vmul.f32 %v384, %v580
      %v609 = vmul.f32 %v385, %v581
      %v610 = vmul.f32 %v386, %v582
      %v611 = vmul.f32 %v387, %v583
      %v612 = vmul.f32 %v388, %v584
      %v613 = vmul.f32 %v389, %v585
      %v614 = vmul.f32 %v390, %v586
      %v615 = vmul.f32 %v391, %v587
      %v616 = vmul.f32 %v392, %v588
      %v617 = vmul.f32 %v393, %v589
      %v618 = vmul.f32 %v394, %v590
      %v619 = vmul.f32 %v395, %v591
      %v620 = vmul.f32 %v396, %v592
      %v621 = vmul.f32 %v397, %v593
      %v622 = vmul.f32 %v398, %v594
      %v623 = vld [vmem:[%s1] sm:$0x1]
      %v625 = vlaneseq
      %v626 = vshrl.u32 %v625, 7
      %v627 = vsub.s32 0, %v626
      %v628 = vrot.slane %v623, %v627
      %v630 = vmul.f32 %v595, %v628
      %v631 = vmul.f32 %v596, %v628
      %v632 = vmul.f32 %v597, %v628
      %v633 = vmul.f32 %v598, %v628
      %v634 = vmul.f32 %v599, %v628
      %v635 = vmul.f32 %v600, %v628
      %v636 = vmul.f32 %v601, %v628
      %v637 = vmul.f32 %v602, %v628
      %v638 = vmul.f32 %v603, %v628
      %v639 = vmul.f32 %v604, %v628
      %v640 = vmul.f32 %v605, %v628
      %v641 = vmul.f32 %v606, %v628
      %v642 = vmul.f32 %v607, %v628
      %v643 = vmul.f32 %v608, %v628
      %v644 = vmul.f32 %v609, %v628
      %v645 = vmul.f32 %v610, %v628
      %v646 = vmul.f32 %v611, %v628
      %v647 = vmul.f32 %v612, %v628
      %v648 = vmul.f32 %v613, %v628
      %v649 = vmul.f32 %v614, %v628
      %v650 = vmul.f32 %v615, %v628
      %v651 = vmul.f32 %v616, %v628
      %v652 = vmul.f32 %v617, %v628
      %v653 = vmul.f32 %v618, %v628
      %v654 = vmul.f32 %v619, %v628
      %v655 = vmul.f32 %v620, %v628
      %v656 = vmul.f32 %v621, %v628
      %v657 = vmul.f32 %v622, %v628
      %v658 = vld [vmem:[%s2] sm:$0x1]
      %v660 = vlaneseq
      %v661 = vshrl.u32 %v660, 7
      %v662 = vsub.s32 0, %v661
      %v663 = vrot.slane %v658, %v662
      %v665 = vadd.f32 %v630, %v663
      %v666 = vadd.f32 %v631, %v663
      %v667 = vadd.f32 %v632, %v663
      %v668 = vadd.f32 %v633, %v663
      %v669 = vadd.f32 %v634, %v663
      %v670 = vadd.f32 %v635, %v663
      %v671 = vadd.f32 %v636, %v663
      %v672 = vadd.f32 %v637, %v663
      %v673 = vadd.f32 %v638, %v663
      %v674 = vadd.f32 %v639, %v663
      %v675 = vadd.f32 %v640, %v663
      %v676 = vadd.f32 %v641, %v663
      %v677 = vadd.f32 %v642, %v663
      %v678 = vadd.f32 %v643, %v663
      %v679 = vadd.f32 %v644, %v663
      %v680 = vadd.f32 %v645, %v663
      %v681 = vadd.f32 %v646, %v663
      %v682 = vadd.f32 %v647, %v663
      %v683 = vadd.f32 %v648, %v663
      %v684 = vadd.f32 %v649, %v663
      %v685 = vadd.f32 %v650, %v663
      %v686 = vadd.f32 %v651, %v663
      %v687 = vadd.f32 %v652, %v663
      %v688 = vadd.f32 %v653, %v663
      %v689 = vadd.f32 %v654, %v663
      %v690 = vadd.f32 %v655, %v663
      %v691 = vadd.f32 %v656, %v663
      %v692 = vadd.f32 %v657, %v663
      %v693 = vpack.c.bf16 %v666, %v665
      %v694 = vpack.c.bf16 %v668, %v667
      %v695 = vpack.c.bf16 %v670, %v669
      %v696 = vpack.c.bf16 %v672, %v671
      %v697 = vpack.c.bf16 %v674, %v673
      %v698 = vpack.c.bf16 %v676, %v675
      %v699 = vpack.c.bf16 %v678, %v677
      %v700 = vpack.c.bf16 %v680, %v679
      %v701 = vpack.c.bf16 %v682, %v681
      %v702 = vpack.c.bf16 %v684, %v683
      %v703 = vpack.c.bf16 %v686, %v685
      %v704 = vpack.c.bf16 %v688, %v687
      %v705 = vpack.c.bf16 %v690, %v689
      %v706 = vpack.c.bf16 %v692, %v691
      %v707 = vld [vmem:[%s3] sm:$0xff]
      %v708 = vld [vmem:[%s3 + $0x8] sm:$0xff]
      %v709 = vld [vmem:[%s3 + $0x10] sm:$0xff]
      %v710 = vld [vmem:[%s3 + $0x18] sm:$0xff]
      %v711 = vpack.c.bf16 %v708, %v707
      %v712 = vpack.c.bf16 %v710, %v709
      %v713 = vld [vmem:[%s4] sm:$0x1]
      %v715 = vlaneseq
      %v716 = vshrl.u32 %v715, 7
      %v717 = vsub.s32 0, %v716
      %v718 = vrot.slane %v713, %v717
      %v721 = vsel %vm257, %v693, 0
      %v724 = vsel %vm257, %v694, 0
      %v727 = vsel %vm257, %v695, 0
      %v730 = vsel %vm257, %v696, 0
      %v733 = vsel %vm257, %v697, 0
      %v736 = vsel %vm257, %v698, 0
      %v739 = vsel %vm257, %v699, 0
      %v742 = vsel %vm257, %v700, 0
      %v745 = vsel %vm257, %v701, 0
      %v748 = vsel %vm257, %v702, 0
      %v751 = vsel %vm257, %v703, 0
      %v754 = vsel %vm257, %v704, 0
      %v757 = vsel %vm257, %v705, 0
      %v760 = vsel %vm257, %v706, 0
      %762 = vmatprep.subr.bf16.mxu0 0
      %763 = vmatpush1.bf16.msra.mxu0 %v711
      %764 = vmatprep.subr.bf16.mxu0 0
      %765 = vmatpush1.bf16.msra.mxu0 %v712
      %766 = vmatprep.subr.bf16.mxu0 0
      %767 = vmatpush1.bf16.msra.mxu0 0
      %768 = vmatprep.subr.bf16.mxu0 0
      %769 = vmatpush1.bf16.msra.mxu0 0
      %770 = vmatprep.subr.bf16.mxu0 0
      %771 = vmatpush1.bf16.msra.mxu0 0
      %772 = vmatprep.subr.bf16.mxu0 0
      %773 = vmatpush1.bf16.msra.mxu0 0
      %774 = vmatprep.subr.bf16.mxu0 0
      %775 = vmatpush1.bf16.msra.mxu0 0
      %776 = vmatprep.subr.bf16.mxu0 0
      %777 = vmatpush1.bf16.msra.mxu0 0
      %778 = vmatprep.subr.bf16.mxu0 0
      %779 = vmatpush1.bf16.msra.mxu0 0
      %780 = vmatprep.subr.bf16.mxu0 0
      %781 = vmatpush1.bf16.msra.mxu0 0
      %782 = vmatprep.subr.bf16.mxu0 0
      %783 = vmatpush1.bf16.msra.mxu0 0
      %784 = vmatprep.subr.bf16.mxu0 0
      %785 = vmatpush1.bf16.msra.mxu0 0
      %786 = vmatprep.subr.bf16.mxu0 0
      %787 = vmatpush1.bf16.msra.mxu0 0
      %788 = vmatprep.subr.bf16.mxu0 0
      %789 = vmatpush1.bf16.msra.mxu0 0
      %790 = vmatprep.subr.bf16.mxu0 0
      %791 = vmatpush1.bf16.msra.mxu0 0
      %792 = vmatprep.subr.bf16.mxu0 0
      %793 = vmatpush1.bf16.msra.mxu0 0
      %794 = vmatprep.mubr.bf16.mxu0 0
      %795 = vmatmul.mubr.bf16.gmra.mrb[0].mxu0 %v721
      %v796 = vpop.f32.mrb[0].mxu0
      %v797 = vadd.f32 %v718, %v796
      %v798 = vpop.f32.mrb[0].mxu0
      %v799 = vpop.f32.mrb[0].mxu0
      %v800 = vadd.f32 %v718, %v799
      %v801 = vpop.f32.mrb[0].mxu0
      %802 = vmatprep.mubr.bf16.mxu0 0
      %803 = vmatmul.mubr.bf16.gmra.mrb[0].mxu0 %v724
      %v804 = vpop.f32.mrb[0].mxu0
      %v805 = vadd.f32 %v718, %v804
      %v806 = vpop.f32.mrb[0].mxu0
      %v807 = vpop.f32.mrb[0].mxu0
      %v808 = vadd.f32 %v718, %v807
      %v809 = vpop.f32.mrb[0].mxu0
      %810 = vmatprep.mubr.bf16.mxu0 0
      %811 = vmatmul.mubr.bf16.gmra.mrb[0].mxu0 %v727
      %v812 = vpop.f32.mrb[0].mxu0
      %v813 = vadd.f32 %v718, %v812
      %v814 = vpop.f32.mrb[0].mxu0
      %v815 = vpop.f32.mrb[0].mxu0
      %v816 = vadd.f32 %v718, %v815
      %v817 = vpop.f32.mrb[0].mxu0
      %818 = vmatprep.mubr.bf16.mxu0 0
      %819 = vmatmul.mubr.bf16.gmra.mrb[0].mxu0 %v730
      %v820 = vpop.f32.mrb[0].mxu0
      %v821 = vadd.f32 %v718, %v820
      %v822 = vpop.f32.mrb[0].mxu0
      %v823 = vpop.f32.mrb[0].mxu0
      %v824 = vadd.f32 %v718, %v823
      %v825 = vpop.f32.mrb[0].mxu0
      %826 = vmatprep.mubr.bf16.mxu0 0
      %827 = vmatmul.mubr.bf16.gmra.mrb[0].mxu0 %v733
      %v828 = vpop.f32.mrb[0].mxu0
      %v829 = vadd.f32 %v718, %v828
      %v830 = vpop.f32.mrb[0].mxu0
      %v831 = vpop.f32.mrb[0].mxu0
      %v832 = vadd.f32 %v718, %v831
      %v833 = vpop.f32.mrb[0].mxu0
      %834 = vmatprep.mubr.bf16.mxu0 0
      %835 = vmatmul.mubr.bf16.gmra.mrb[0].mxu0 %v736
      %v836 = vpop.f32.mrb[0].mxu0
      %v837 = vadd.f32 %v718, %v836
      %v838 = vpop.f32.mrb[0].mxu0
      %v839 = vpop.f32.mrb[0].mxu0
      %v840 = vadd.f32 %v718, %v839
      %v841 = vpop.f32.mrb[0].mxu0
      %842 = vmatprep.mubr.bf16.mxu0 0
      %843 = vmatmul.mubr.bf16.gmra.mrb[0].mxu0 %v739
      %v844 = vpop.f32.mrb[0].mxu0
      %v845 = vadd.f32 %v718, %v844
      %v846 = vpop.f32.mrb[0].mxu0
      %v847 = vpop.f32.mrb[0].mxu0
      %v848 = vadd.f32 %v718, %v847
      %v849 = vpop.f32.mrb[0].mxu0
      %850 = vmatprep.mubr.bf16.mxu0 0
      %851 = vmatmul.mubr.bf16.gmra.mrb[0].mxu0 %v742
      %v852 = vpop.f32.mrb[0].mxu0
      %v853 = vadd.f32 %v718, %v852
      %v854 = vpop.f32.mrb[0].mxu0
      %v855 = vpop.f32.mrb[0].mxu0
      %v856 = vadd.f32 %v718, %v855
      %v857 = vpop.f32.mrb[0].mxu0
      %858 = vmatprep.mubr.bf16.mxu0 0
      %859 = vmatmul.mubr.bf16.gmra.mrb[0].mxu0 %v745
      %v860 = vpop.f32.mrb[0].mxu0
      %v861 = vadd.f32 %v718, %v860
      %v862 = vpop.f32.mrb[0].mxu0
      %v863 = vpop.f32.mrb[0].mxu0
      %v864 = vadd.f32 %v718, %v863
      %v865 = vpop.f32.mrb[0].mxu0
      %866 = vmatprep.mubr.bf16.mxu0 0
      %867 = vmatmul.mubr.bf16.gmra.mrb[0].mxu0 %v748
      %v868 = vpop.f32.mrb[0].mxu0
      %v869 = vadd.f32 %v718, %v868
      %v870 = vpop.f32.mrb[0].mxu0
      %v871 = vpop.f32.mrb[0].mxu0
      %v872 = vadd.f32 %v718, %v871
      %v873 = vpop.f32.mrb[0].mxu0
      %874 = vmatprep.mubr.bf16.mxu0 0
      %875 = vmatmul.mubr.bf16.gmra.mrb[0].mxu0 %v751
      %v876 = vpop.f32.mrb[0].mxu0
      %v877 = vadd.f32 %v718, %v876
      %v878 = vpop.f32.mrb[0].mxu0
      %v879 = vpop.f32.mrb[0].mxu0
      %v880 = vadd.f32 %v718, %v879
      %v881 = vpop.f32.mrb[0].mxu0
      %882 = vmatprep.mubr.bf16.mxu0 0
      %883 = vmatmul.mubr.bf16.gmra.mrb[0].mxu0 %v754
      %v884 = vpop.f32.mrb[0].mxu0
      %v885 = vadd.f32 %v718, %v884
      %v886 = vpop.f32.mrb[0].mxu0
      %v887 = vpop.f32.mrb[0].mxu0
      %v888 = vadd.f32 %v718, %v887
      %v889 = vpop.f32.mrb[0].mxu0
      %890 = vmatprep.mubr.bf16.mxu0 0
      %891 = vmatmul.mubr.bf16.gmra.mrb[0].mxu0 %v757
      %v892 = vpop.f32.mrb[0].mxu0
      %v893 = vadd.f32 %v718, %v892
      %v894 = vpop.f32.mrb[0].mxu0
      %v895 = vpop.f32.mrb[0].mxu0
      %v896 = vadd.f32 %v718, %v895
      %v897 = vpop.f32.mrb[0].mxu0
      %898 = vmatprep.mubr.bf16.mxu0 0
      %899 = vmatmul.mubr.bf16.gmra.mrb[0].mxu0 %v760
      %v900 = vpop.f32.mrb[0].mxu0
      %v901 = vadd.f32 %v718, %v900
      %v902 = vpop.f32.mrb[0].mxu0
      %v903 = vpop.f32.mrb[0].mxu0
      %v904 = vadd.f32 %v718, %v903
      %v905 = vpop.f32.mrb[0].mxu0
      %906 = vdwg.mxu0
      %v907 = vpack.c.bf16 %v800, %v797
      %v908 = vpack.c.bf16 %v808, %v805
      %v909 = vpack.c.bf16 %v816, %v813
      %v910 = vpack.c.bf16 %v824, %v821
      %v911 = vpack.c.bf16 %v832, %v829
      %v912 = vpack.c.bf16 %v840, %v837
      %v913 = vpack.c.bf16 %v848, %v845
      %v914 = vpack.c.bf16 %v856, %v853
      %v915 = vpack.c.bf16 %v864, %v861
      %v916 = vpack.c.bf16 %v872, %v869
      %v917 = vpack.c.bf16 %v880, %v877
      %v918 = vpack.c.bf16 %v888, %v885
      %v919 = vpack.c.bf16 %v896, %v893
      %v920 = vpack.c.bf16 %v904, %v901
      %v935 = vunpack.c.l.b16 %v907
      %v936 = vunpack.c.h.b16 %v907
      %v937 = vunpack.c.l.b16 %v908
      %v938 = vunpack.c.h.b16 %v908
      %v939 = vunpack.c.l.b16 %v909
      %v940 = vunpack.c.h.b16 %v909
      %v941 = vunpack.c.l.b16 %v910
      %v942 = vunpack.c.h.b16 %v910
      %v943 = vunpack.c.l.b16 %v911
      %v944 = vunpack.c.h.b16 %v911
      %v945 = vunpack.c.l.b16 %v912
      %v946 = vunpack.c.h.b16 %v912
      %v947 = vunpack.c.l.b16 %v913
      %v948 = vunpack.c.h.b16 %v913
      %v949 = vunpack.c.l.b16 %v914
      %v950 = vunpack.c.h.b16 %v914
      %v951 = vunpack.c.l.b16 %v915
      %v952 = vunpack.c.h.b16 %v915
      %v953 = vunpack.c.l.b16 %v916
      %v954 = vunpack.c.h.b16 %v916
      %v955 = vunpack.c.l.b16 %v917
      %v956 = vunpack.c.h.b16 %v917
      %v957 = vunpack.c.l.b16 %v918
      %v958 = vunpack.c.h.b16 %v918
      %v959 = vunpack.c.l.b16 %v919
      %v960 = vunpack.c.h.b16 %v919
      %v961 = vunpack.c.l.b16 %v920
      %v962 = vunpack.c.h.b16 %v920
      %v963 = vpack.c.b16 %v935, %v935
      %v964 = vpack.c.b16 %v936, %v936
      %v965 = vpack.c.b16 %v937, %v937
      %v966 = vpack.c.b16 %v938, %v938
      %v967 = vpack.c.b16 %v939, %v939
      %v968 = vpack.c.b16 %v940, %v940
      %v969 = vpack.c.b16 %v941, %v941
      %v970 = vpack.c.b16 %v942, %v942
      %v971 = vpack.c.b16 %v943, %v943
      %v972 = vpack.c.b16 %v944, %v944
      %v973 = vpack.c.b16 %v945, %v945
      %v974 = vpack.c.b16 %v946, %v946
      %v975 = vpack.c.b16 %v947, %v947
      %v976 = vpack.c.b16 %v948, %v948
      %v977 = vpack.c.b16 %v949, %v949
      %v978 = vpack.c.b16 %v950, %v950
      %v979 = vpack.c.b16 %v951, %v951
      %v980 = vpack.c.b16 %v952, %v952
      %v981 = vpack.c.b16 %v953, %v953
      %v982 = vpack.c.b16 %v954, %v954
      %v983 = vpack.c.b16 %v955, %v955
      %v984 = vpack.c.b16 %v956, %v956
      %v985 = vpack.c.b16 %v957, %v957
      %v986 = vpack.c.b16 %v958, %v958
      %v987 = vpack.c.b16 %v959, %v959
      %v988 = vpack.c.b16 %v960, %v960
      %v989 = vpack.c.b16 %v961, %v961
      %v990 = vpack.c.b16 %v962, %v962
      %vm1019 = vcmask 257024
      %1020 = vst.msk [vmem:[%s226] sm:$0xf] %vm1019, %v963
      %1021 = vst.msk [vmem:[%s226 + $0x4] sm:$0xf] %vm1019, %v964
      %1022 = vst.msk [vmem:[%s226 + $0x8] sm:$0xf] %vm1019, %v965
      %1023 = vst.msk [vmem:[%s226 + $0xc] sm:$0xf] %vm1019, %v966
      %1024 = vst.msk [vmem:[%s226 + $0x10] sm:$0xf] %vm1019, %v967
      %1025 = vst.msk [vmem:[%s226 + $0x14] sm:$0xf] %vm1019, %v968
      %1026 = vst.msk [vmem:[%s226 + $0x18] sm:$0xf] %vm1019, %v969
      %1027 = vst.msk [vmem:[%s226 + $0x1c] sm:$0xf] %vm1019, %v970
      %1028 = vst.msk [vmem:[%s226 + $0x20] sm:$0xf] %vm1019, %v971
      %1029 = vst.msk [vmem:[%s226 + $0x24] sm:$0xf] %vm1019, %v972
      %1030 = vst.msk [vmem:[%s226 + $0x28] sm:$0xf] %vm1019, %v973
      %1031 = vst.msk [vmem:[%s226 + $0x2c] sm:$0xf] %vm1019, %v974
      %1032 = vst.msk [vmem:[%s226 + $0x30] sm:$0xf] %vm1019, %v975
      %1033 = vst.msk [vmem:[%s226 + $0x34] sm:$0xf] %vm1019, %v976
      %1034 = vst.msk [vmem:[%s226 + $0x38] sm:$0xf] %vm1019, %v977
      %1035 = vst.msk [vmem:[%s226 + $0x3c] sm:$0xf] %vm1019, %v978
      %1036 = vst.msk [vmem:[%s226 + $0x40] sm:$0xf] %vm1019, %v979
      %1037 = vst.msk [vmem:[%s226 + $0x44] sm:$0xf] %vm1019, %v980
      %1038 = vst.msk [vmem:[%s226 + $0x48] sm:$0xf] %vm1019, %v981
      %1039 = vst.msk [vmem:[%s226 + $0x4c] sm:$0xf] %vm1019, %v982
      %1040 = vst.msk [vmem:[%s226 + $0x50] sm:$0xf] %vm1019, %v983
      %1041 = vst.msk [vmem:[%s226 + $0x54] sm:$0xf] %vm1019, %v984
      %1042 = vst.msk [vmem:[%s226 + $0x58] sm:$0xf] %vm1019, %v985
      %1043 = vst.msk [vmem:[%s226 + $0x5c] sm:$0xf] %vm1019, %v986
      %1044 = vst.msk [vmem:[%s226 + $0x60] sm:$0xf] %vm1019, %v987
      %1045 = vst.msk [vmem:[%s226 + $0x64] sm:$0xf] %vm1019, %v988
      %1046 = vst.msk [vmem:[%s226 + $0x68] sm:$0xf] %vm1019, %v989
      %1047 = vst.msk [vmem:[%s226 + $0x6c] sm:$0xf] %vm1019, %v990
      %s1048 = smul.u32 28, %s16
      %p1049 = scmp.lt.s32.totalorder %s1048, 83
      %s1050 = scalar_select %p1049, %s1048, 83
      %s1051 = smul.addr %s1050, 4
      %s1052 = scalar_lea.vmem %s5, %s1051
      // Predicated region
      $region41: #{tpu_custom_call.1} parent=39 // pred_check
        %p1053 = pneg %p144
      $region42: #{tpu_custom_call.1} parent=39 // pred_check_branch
        %1055 = sbr.rel (%p1053) target = $region44
      $region43: #{tpu_custom_call.1} parent=39 // pred_region
        %s1056 = smul.u32 28, %s16
      $region44: #{tpu_custom_call.1} parent=39 // pred_fallthru
        _
    $region40: #{tpu_custom_call.1} parent=5 // pred_fallthru
      _
    %p1057 = scmp.le.s32.totalorder 2, %s11
    // Predicated region
    $region45: #{tpu_custom_call.1} parent=5 // pred_check
      %p1058 = pneg %p1057
    $region46: #{tpu_custom_call.1} parent=5 // pred_check_branch
      %1060 = sbr.rel (%p1058) target = $region48
    $region47: #{tpu_custom_call.1} parent=5 // pred_region
      %s1061 = ssub.s32 %s11, 2
      // Predicated region
      $region49: #{tpu_custom_call.1} parent=47 // pred_check
        %p1062 = pneg %p150
      $region50: #{tpu_custom_call.1} parent=47 // pred_check_branch
        %1064 = sbr.rel (%p1062) target = $region52
      $region51: #{tpu_custom_call.1} parent=47 // pred_region
        %s1065 = smul.u32 28, %s17
        %p1066 = scmp.lt.s32.totalorder %s1065, 83
        %s1067 = scalar_select %p1066, %s1065, 83
        %s1068 = smul.addr %s1067, 4
        %s1069 = scalar_lea.vmem %s5, %s1068
      $region52: #{tpu_custom_call.1} parent=47 // pred_fallthru
        _
    $region48: #{tpu_custom_call.1} parent=5 // pred_fallthru
      _
  $region6: #{tpu_custom_call.1} parent=0 // loop_footer
    %s15 = sadd.s32 1, %s11
  $region7: #{tpu_custom_call.1} parent=0 // loop_footer_branch
    %10 = sbr.rel target = $region3
  $region8: #{tpu_custom_call.1} parent=0 // loop_exit
    _

</llo_original>
